<compile_context>
chip_gen: v6e
topology: v6e:2x2x1
jax: 0.10.0
libtpu: 0.0.40
codegen_flags: <defaults>
</compile_context>

<pallas_src>
import jax
import jax.numpy as jnp
from jax.experimental import pallas as pl
from jax.experimental.pallas import tpu as pltpu


def _round_up(x, m):
    return (x + m - 1) // m * m


def _batch_per_block(n, h):
    """Batch elements folded into the kernel's M rows per grid step.

    Targets M = nb*H >= ~128 so the MXU rows are reasonably filled; partial
    blocks must keep M a multiple of 8 (sublane tile).  At production batch
    sizes this still leaves multiple "parallel" grid steps so both of v7x's
    TensorCores stay busy.
    """
    target = max(1, min(n, -(-128 // h)))
    for d in range(target, 0, -1):
        if n % d == 0 and (d == n or (d * h) % 8 == 0):
            return d
    return n


# ---------------------------------------------------------------------------
# Pallas kernel: fused (folded) BatchNorm + ReLU + 3x3 conv, stride 1, pad 1,
# no bias, expressed as one wide-K banded matmul per (fused-concat) source.
# ---------------------------------------------------------------------------
def _make_conv_kernel(h, num_src):
    def kernel(*refs):
        # refs = [x_0, scale_0, shift_0, w_0, ..., x_{S-1}, ..., o_ref]
        #   x_s    : (M, Kp_s)     M = nb*H lane-dense activation rows
        #   scale_s: (1, Kp_s)     folded BN scale (zero in pad columns)
        #   shift_s: (1, Kp_s)     folded BN shift (zero in pad columns)
        #   w_s    : (3*Kp_s, Np)  wide banded conv weight (dy-stacked, padded)
        #   o_ref  : (M, Np)       conv output rows (lane dense, 128-multiple)
        o_ref = refs[4 * num_src]
        m = o_ref.shape[0]
        acc = None
        for s in range(num_src):
            x_ref, sc_ref, sh_ref, w_ref = refs[4 * s:4 * s + 4]
            kp = x_ref.shape[1]

            # Folded BatchNorm + ReLU on the VPU, full lane width.
            y = jnp.maximum(x_ref[...] * sc_ref[...] + sh_ref[...], 0.0)

            # Row halos via XLU rolls (no sublane-offset ref slices, so no
            # relayout before the MXU push).  Per-image H-border rows are
            # zeroed — this also isolates batch elements folded into M.
            # W-direction conv padding is folded into the banded weights.
            ridx = jax.lax.broadcasted_iota(jnp.int32, (m, kp), 0) % h
            y_up = jnp.where(ridx == 0, 0.0,
                             pltpu.roll(y, shift=1, axis=0))        # row i-1
            y_dn = jnp.where(ridx == h - 1, 0.0,
                             pltpu.roll(y, shift=m - 1, axis=0))    # row i+1 (== shift -1)

            # Lane concat of three 128-aligned blocks -> ONE wide-K MXU matmul.
            ys = jnp.concatenate([y_up, y, y_dn], axis=1)
            # TODO(synk): cast ys / w to bf16 at production channel counts
            # (v6e/v7x MXU is bf16-native; also halves weight VMEM); kept f32
            # here for exactness and v5e's f32-only VPU.
            d = jnp.dot(ys, w_ref[...], preferred_element_type=jnp.float32)
            acc = d if acc is None else acc + d
        o_ref[...] = acc.astype(o_ref.dtype)

    return kernel


def _wide_banded_weights(w_hwio, width, kp, ncols_pad, shuffle_r=None):
    """Fold the 3x3 conv taps (+ W-direction zero padding, + optional
    pixel_shuffle column permutation) into one (3*kp, ncols_pad) matrix W so
    that, for staged rows ys[i] = [y[i-1] | y[i] | y[i+1]] (zero rows at the
    image's H border, zero-padded to kp lanes per block), out[i] = ys[i] @ W
    equals the padded 3x3 convolution of row i (pixel-shuffled if requested).
    """
    cin, cout = w_hwio.shape[2], w_hwio.shape[3]
    jj = jnp.arange(width)[:, None]                    # input column index
    j = jnp.arange(width)[None, :]                     # output column index
    dx = jj - j + 1                                    # tap index 0..2
    valid = (dx >= 0) & (dx <= 2)                      # encodes W-dir zero pad
    wg = w_hwio[:, jnp.clip(dx, 0, 2)]                 # (3, W, W, Cin, Cout)
    wg = jnp.where(valid[None, :, :, None, None], wg, 0.0)
    wg = jnp.transpose(wg, (0, 1, 3, 2, 4))            # (dy, jj, c, j, o)
    if shuffle_r is None:
        band = wg.reshape(3, width * cin, width * cout)
    else:
        r = shuffle_r
        cf = cout // (r * r)
        wg = wg.reshape(3, width, cin, width, cf, r, r)   # (dy, jj, c, j, cf, a, b)
        wg = jnp.transpose(wg, (0, 1, 2, 5, 3, 6, 4))     # (dy, jj, c, a, j, b, cf)
        band = wg.reshape(3, width * cin, r * width * r * cf)
    ncols = band.shape[2]
    # Zero-pad K rows (width*cin -> kp) and output columns (ncols -> ncols_pad),
    # then stack the 3 dy bands along K into a single wide matrix.
    band = jnp.pad(band, ((0, 0), (0, kp - width * cin), (0, ncols_pad - ncols)))
    return band.reshape(3 * kp, ncols_pad)


def fused_bn_relu_conv3x3(sources, gamma, beta, w_oihw, *, shuffle_r=None, eps=1e-5):
    """BN(train-mode stats) -> ReLU -> 3x3 conv (pad 1, no bias) [-> pixel_shuffle].

    `sources` is a list of NHWC tensors that are conceptually concatenated
    along channels; the concat is fused into the kernel (each source is its
    own K block).  gamma / beta / w_oihw are the BN/conv parameters over the
    concatenated channels.
    """
    n, h, width = sources[0].shape[:3]
    cout = w_oihw.shape[0]
    w_hwio = jnp.transpose(w_oihw, (2, 3, 1, 0))       # (3, 3, Cin_total, Cout)

    if shuffle_r is None:
        cf = None
        ncols = width * cout
    else:
        cf = cout // (shuffle_r * shuffle_r)
        ncols = shuffle_r * width * shuffle_r * cf
    np_cols = _round_up(ncols, 128)                    # lane-dense output stores

    nb = _batch_per_block(n, h)                        # batch elems folded into M
    m = nb * h
    grid_n = n // nb

    # TODO(synk): BatchNorm running_mean/running_var momentum update (training
    # side effect) is not modeled.
    flat_inputs, in_specs = [], []
    c0 = 0
    for x in sources:
        cin = x.shape[3]
        kp = _round_up(width * cin, 128)
        pad = kp - width * cin

        # Training-mode BatchNorm statistics (biased variance) for this
        # source's channel slice, folded to a per-channel scale/shift and
        # tiled to the (W*Cin) lane layout.
        mean = jnp.mean(x, axis=(0, 1, 2))
        var = jnp.var(x, axis=(0, 1, 2))
        scale = gamma[c0:c0 + cin] * jax.lax.rsqrt(var + eps)
        shift = beta[c0:c0 + cin] - mean * scale
        scale_t = jnp.pad(jnp.tile(scale, width), (0, pad)).reshape(1, kp)
        shift_t = jnp.pad(jnp.tile(shift, width), (0, pad)).reshape(1, kp)

        x_rows = jnp.pad(x.reshape(n * h, width * cin), ((0, 0), (0, pad)))
        wb = _wide_banded_weights(w_hwio[:, :, c0:c0 + cin, :], width, kp,
                                  np_cols, shuffle_r)

        flat_inputs += [x_rows, scale_t, shift_t, wb]
        # TODO(synk): at production sizes, single-buffer the constant operands
        # (pipeline_mode=pl.Buffered(1)), add a W-tile grid axis with a
        # (Tw+2)-column halo so the banded weight stops scaling as O(W^2), and
        # set vmem_limit_bytes explicitly.
        in_specs += [
            pl.BlockSpec((m, kp), lambda i: (i, 0)),
            pl.BlockSpec((1, kp), lambda i: (0, 0)),
            pl.BlockSpec((1, kp), lambda i: (0, 0)),
            pl.BlockSpec((3 * kp, np_cols), lambda i: (0, 0)),
        ]
        c0 += cin

    out_rows = pl.pallas_call(
        _make_conv_kernel(h, len(sources)),
        out_shape=jax.ShapeDtypeStruct((n * h, np_cols), sources[0].dtype),
        grid_spec=pltpu.PrefetchScalarGridSpec(
            num_scalar_prefetch=0,
            grid=(grid_n,),
            in_specs=in_specs,
            out_specs=pl.BlockSpec((m, np_cols), lambda i: (i, 0)),
        ),
        compiler_params=pltpu.CompilerParams(
            dimension_semantics=("parallel",)),
    )(*flat_inputs)

    out_rows = out_rows[:, :ncols].reshape(n, h, ncols)
    if shuffle_r is None:
        return out_rows.reshape(n, h, width, cout)               # NHWC conv output
    return out_rows.reshape(n, h * shuffle_r, width * shuffle_r, cf)  # shuffled NHWC


# ---------------------------------------------------------------------------
# match_size_2d / Decode forward (NHWC plumbing around the Pallas conv kernel)
# ---------------------------------------------------------------------------
def _pad_or_crop(t, axis, before, after):
    if before < 0:
        t = jax.lax.slice_in_dim(t, -before, t.shape[axis], axis=axis)
        before = 0
    if after < 0:
        t = jax.lax.slice_in_dim(t, 0, t.shape[axis] + after, axis=axis)
        after = 0
    if before or after:
        pads = [(0, 0)] * t.ndim
        pads[axis] = (before, after)
        t = jnp.pad(t, pads)
    return t


def match_size_2d_nhwc(t, target_h, target_w):
    dh = target_h - t.shape[1]
    dw = target_w - t.shape[2]
    t = _pad_or_crop(t, 2, dw // 2, dw - dw // 2)
    t = _pad_or_crop(t, 1, dh // 2, dh - dh // 2)
    return t


def decode_forward(inputs_nchw, skip_nchw, params, *, scale_factor=2,
                   upscale="nearest", eps=1e-5):
    """Forward pass of Decode (module=identity). NCHW in/out like PyTorch."""
    if inputs_nchw is None:
        return skip_nchw                                   # module(skip), identity

    # TODO(synk): keep NHWC end-to-end in the surrounding network to drop
    # these NCHW<->NHWC transposes.
    skip_nhwc = jnp.transpose(skip_nchw, (0, 2, 3, 1))
    x_nhwc = jnp.transpose(inputs_nchw, (0, 2, 3, 1))
    r = scale_factor

    if upscale == "nearest":
        # TODO(synk): fold the nearest-neighbor repeat into the reduce kernel's
        # banded weights / row indexing to avoid materializing the 4x tensor.
        up_nhwc = jnp.repeat(jnp.repeat(x_nhwc, r, axis=1), r, axis=2)
    elif upscale == "shuffle":
        # Upscale = Conv(F, F*r*r) + pixel_shuffle, fused into one kernel call.
        up_nhwc = fused_bn_relu_conv3x3([x_nhwc], params["up_gamma"],
                                        params["up_beta"], params["up_w"],
                                        shuffle_r=r, eps=eps)
    else:
        # TODO(synk): 'linear'/'bilinear' Upsample and 'conv' (ConvTranspose2d)
        # upscale methods are not implemented.
        raise NotImplementedError(upscale)

    trim = match_size_2d_nhwc(up_nhwc, skip_nhwc.shape[1], skip_nhwc.shape[2])
    # reduce = Conv(2F, F); the channel concat is fused into the kernel.
    red = fused_bn_relu_conv3x3([trim, skip_nhwc], params["red_gamma"],
                                params["red_beta"], params["red_w"], eps=eps)
    return jnp.transpose(red, (0, 3, 1, 2))                # back to NCHW


# ---------------------------------------------------------------------------
# Pure-JAX reference mirroring the PyTorch module (training-mode BN)
# ---------------------------------------------------------------------------
def _conv_block_ref(x_nchw, gamma, beta, w_oihw, eps=1e-5):
    mean = jnp.mean(x_nchw, axis=(0, 2, 3), keepdims=True)
    var = jnp.var(x_nchw, axis=(0, 2, 3), keepdims=True)
    y = (x_nchw - mean) * jax.lax.rsqrt(var + eps)
    y = y * gamma.reshape(1, -1, 1, 1) + beta.reshape(1, -1, 1, 1)
    y = jnp.maximum(y, 0.0)
    return jax.lax.conv_general_dilated(
        y, w_oihw, window_strides=(1, 1), padding=((1, 1), (1, 1)),
        dimension_numbers=("NCHW", "OIHW", "NCHW"))


def _decode_ref(inputs, skip, params, r=2, upscale="nearest", eps=1e-5):
    if upscale == "shuffle":
        conv = _conv_block_ref(inputs, params["up_gamma"], params["up_beta"],
                               params["up_w"], eps)
        n, k, h, w = conv.shape
        cf = k // (r * r)
        t = conv.reshape(n, cf, r, r, h, w)
        t = jnp.transpose(t, (0, 1, 4, 2, 5, 3))
        up = t.reshape(n, cf, h * r, w * r)
    else:
        up = jnp.repeat(jnp.repeat(inputs, r, axis=2), r, axis=3)
    dh = skip.shape[2] - up.shape[2]
    dw = skip.shape[3] - up.shape[3]
    up = _pad_or_crop(up, 3, dw // 2, dw - dw // 2)
    up = _pad_or_crop(up, 2, dh // 2, dh - dh // 2)
    cat = jnp.concatenate([up, skip], axis=1)
    return _conv_block_ref(cat, params["red_gamma"], params["red_beta"],
                           params["red_w"], eps)


if __name__ == "__main__":
    key = jax.random.PRNGKey(0)
    ks = jax.random.split(key, 8)

    features, r = 4, 2
    n, hi, wi = 2, 8, 8                  # `inputs` spatial (pre-upscale)
    hs, ws = hi * r, wi * r              # `skip` spatial

    inputs = jax.random.normal(ks[0], (n, features, hi, wi), jnp.float32)
    skip = jax.random.normal(ks[1], (n, features, hs, ws), jnp.float32)

    params = {
        # reduce = Conv(2*features, features)
        "red_w": 0.1 * jax.random.normal(ks[2], (features, 2 * features, 3, 3), jnp.float32),
        "red_gamma": 1.0 + 0.1 * jax.random.normal(ks[3], (2 * features,), jnp.float32),
        "red_beta": 0.1 * jax.random.normal(ks[4], (2 * features,), jnp.float32),
        # Upscale.conv = Conv(features, features*r*r)  (used when upscale='shuffle')
        "up_w": 0.1 * jax.random.normal(ks[5], (features * r * r, features, 3, 3), jnp.float32),
        "up_gamma": 1.0 + 0.1 * jax.random.normal(ks[6], (features,), jnp.float32),
        "up_beta": 0.1 * jax.random.normal(ks[7], (features,), jnp.float32),
    }

    fwd = jax.jit(decode_forward, static_argnames=("scale_factor", "upscale"))

    for method in ("nearest", "shuffle"):
        out = jax.block_until_ready(
            fwd(inputs, skip, params, scale_factor=r, upscale=method))
        ref = _decode_ref(inputs, skip, params, r=r, upscale=method)
        assert out.shape == (n, features, hs, ws), (method, out.shape)
        assert jnp.allclose(out, ref, atol=1e-3, rtol=1e-3), method

    # `inputs is None` branch: Decode returns module(skip) == skip (identity).
    none_out = decode_forward(None, skip, params, scale_factor=r)
    assert jnp.allclose(none_out, skip)

    print("KERNEL_OK")
</pallas_src>

<mosaic_0001>
module attributes {stable_mosaic.version = 11 : i64} {
  func.func @kernel(%arg0: i32, %arg1: memref<32x128xf32, #tpu.memory_space<vmem>>, %arg2: memref<1x128xf32, #tpu.memory_space<vmem>>, %arg3: memref<1x128xf32, #tpu.memory_space<vmem>>, %arg4: memref<384x128xf32, #tpu.memory_space<vmem>>, %arg5: memref<32x128xf32, #tpu.memory_space<vmem>>, %arg6: memref<1x128xf32, #tpu.memory_space<vmem>>, %arg7: memref<1x128xf32, #tpu.memory_space<vmem>>, %arg8: memref<384x128xf32, #tpu.memory_space<vmem>>, %arg9: memref<32x128xf32, #tpu.memory_space<vmem>>) attributes {dimension_semantics = [#tpu.dimension_semantics<parallel>], iteration_bounds = array<i64: 1>, scalar_prefetch = 0 : i64, scratch_operands = 0 : i64, tpu.core_type = #tpu.core_type<tc>, window_params = [{transform_indices = @transform_0, window_bounds = array<i64: 32, 128>}, {pipeline_mode = #tpu.pipeline_mode<synchronous>, transform_indices = @transform_1, window_bounds = array<i64: 1, 128>}, {pipeline_mode = #tpu.pipeline_mode<synchronous>, transform_indices = @transform_2, window_bounds = array<i64: 1, 128>}, {pipeline_mode = #tpu.pipeline_mode<synchronous>, transform_indices = @transform_3, window_bounds = array<i64: 384, 128>}, {transform_indices = @transform_4, window_bounds = array<i64: 32, 128>}, {pipeline_mode = #tpu.pipeline_mode<synchronous>, transform_indices = @transform_5, window_bounds = array<i64: 1, 128>}, {pipeline_mode = #tpu.pipeline_mode<synchronous>, transform_indices = @transform_6, window_bounds = array<i64: 1, 128>}, {pipeline_mode = #tpu.pipeline_mode<synchronous>, transform_indices = @transform_7, window_bounds = array<i64: 384, 128>}, {transform_indices = @transform_8, window_bounds = array<i64: 32, 128>}]} {
    %c0 = arith.constant 0 : index
    %c0_0 = arith.constant 0 : index
    %0 = vector.load %arg1[%c0, %c0_0] : memref<32x128xf32, #tpu.memory_space<vmem>>, vector<32x128xf32>
    %c0_1 = arith.constant 0 : index
    %c0_2 = arith.constant 0 : index
    %1 = vector.load %arg2[%c0_1, %c0_2] : memref<1x128xf32, #tpu.memory_space<vmem>>, vector<1x128xf32>
    %2 = vector.broadcast %1 : vector<1x128xf32> to vector<32x128xf32>
    %3 = arith.mulf %0, %2 : vector<32x128xf32>
    %c0_3 = arith.constant 0 : index
    %c0_4 = arith.constant 0 : index
    %4 = vector.load %arg3[%c0_3, %c0_4] : memref<1x128xf32, #tpu.memory_space<vmem>>, vector<1x128xf32>
    %5 = vector.broadcast %4 : vector<1x128xf32> to vector<32x128xf32>
    %6 = arith.addf %3, %5 : vector<32x128xf32>
    %cst = arith.constant 0.000000e+00 : f32
    %7 = vector.broadcast %cst : f32 to vector<32x128xf32>
    %8 = arith.maximumf %6, %7 : vector<32x128xf32>
    %9 = tpu.iota {dimensions = array<i32: 0>} : vector<32x128xi32>
    %c16_i32 = arith.constant 16 : i32
    %c0_i32 = arith.constant 0 : i32
    %10 = arith.cmpi eq, %c16_i32, %c0_i32 : i32
    %c1_i32 = arith.constant 1 : i32
    %11 = arith.select %10, %c1_i32, %c16_i32 : i32
    %12 = vector.broadcast %11 : i32 to vector<32x128xi32>
    %13 = arith.remsi %9, %12 : vector<32x128xi32>
    %c0_i32_5 = arith.constant 0 : i32
    %14 = vector.broadcast %c0_i32_5 : i32 to vector<32x128xi32>
    %15 = arith.cmpi ne, %13, %14 : vector<32x128xi32>
    %c0_i32_6 = arith.constant 0 : i32
    %16 = vector.broadcast %c0_i32_6 : i32 to vector<32x128xi32>
    %17 = arith.cmpi slt, %13, %16 : vector<32x128xi32>
    %c0_i32_7 = arith.constant 0 : i32
    %18 = arith.cmpi slt, %11, %c0_i32_7 : i32
    %19 = vector.broadcast %18 : i1 to vector<32x128xi1>
    %20 = vector.broadcast %19 : vector<32x128xi1> to vector<32x128xi1>
    %21 = arith.xori %17, %20 : vector<32x128xi1>
    %22 = arith.andi %21, %15 : vector<32x128xi1>
    %23 = vector.broadcast %11 : i32 to vector<32x128xi32>
    %24 = arith.addi %13, %23 : vector<32x128xi32>
    %25 = arith.select %22, %24, %13 : vector<32x128xi1>, vector<32x128xi32>
    %c0_i32_8 = arith.constant 0 : i32
    %26 = vector.broadcast %c0_i32_8 : i32 to vector<32x128xi32>
    %27 = arith.cmpi eq, %25, %26 : vector<32x128xi32>
    %c1_i32_9 = arith.constant 1 : i32
    %28 = tpu.dynamic_rotate %8 by %c1_i32_9 dim 0 : vector<32x128xf32>, i32 -> vector<32x128xf32>
    %cst_10 = arith.constant 0.000000e+00 : f32
    %29 = vector.broadcast %cst_10 : f32 to vector<32x128xf32>
    %30 = arith.select %27, %29, %28 : vector<32x128xi1>, vector<32x128xf32>
    %c15_i32 = arith.constant 15 : i32
    %31 = vector.broadcast %c15_i32 : i32 to vector<32x128xi32>
    %32 = arith.cmpi eq, %25, %31 : vector<32x128xi32>
    %c31_i32 = arith.constant 31 : i32
    %33 = tpu.dynamic_rotate %8 by %c31_i32 dim 0 : vector<32x128xf32>, i32 -> vector<32x128xf32>
    %cst_11 = arith.constant 0.000000e+00 : f32
    %34 = vector.broadcast %cst_11 : f32 to vector<32x128xf32>
    %35 = arith.select %32, %34, %33 : vector<32x128xi1>, vector<32x128xf32>
    %36 = tpu.concatenate %30, %8, %35 in 1 : vector<32x128xf32>, vector<32x128xf32>, vector<32x128xf32> -> vector<32x384xf32>
    %c0_12 = arith.constant 0 : index
    %c0_13 = arith.constant 0 : index
    %37 = vector.load %arg4[%c0_12, %c0_13] : memref<384x128xf32, #tpu.memory_space<vmem>>, vector<384x128xf32>
    %cst_14 = arith.constant dense<0.000000e+00> : vector<32x128xf32>
    %38 = tpu.matmul %36, %37, %cst_14 {dimension_numbers = #tpu.dot_dimension_numbers<[1], [0], [0], [1], [0, 0, 1, 1], [], []>} : vector<32x384xf32>, vector<384x128xf32>, vector<32x128xf32> -> vector<32x128xf32>
    %c0_15 = arith.constant 0 : index
    %c0_16 = arith.constant 0 : index
    %39 = vector.load %arg5[%c0_15, %c0_16] : memref<32x128xf32, #tpu.memory_space<vmem>>, vector<32x128xf32>
    %c0_17 = arith.constant 0 : index
    %c0_18 = arith.constant 0 : index
    %40 = vector.load %arg6[%c0_17, %c0_18] : memref<1x128xf32, #tpu.memory_space<vmem>>, vector<1x128xf32>
    %41 = vector.broadcast %40 : vector<1x128xf32> to vector<32x128xf32>
    %42 = arith.mulf %39, %41 : vector<32x128xf32>
    %c0_19 = arith.constant 0 : index
    %c0_20 = arith.constant 0 : index
    %43 = vector.load %arg7[%c0_19, %c0_20] : memref<1x128xf32, #tpu.memory_space<vmem>>, vector<1x128xf32>
    %44 = vector.broadcast %43 : vector<1x128xf32> to vector<32x128xf32>
    %45 = arith.addf %42, %44 : vector<32x128xf32>
    %cst_21 = arith.constant 0.000000e+00 : f32
    %46 = vector.broadcast %cst_21 : f32 to vector<32x128xf32>
    %47 = arith.maximumf %45, %46 : vector<32x128xf32>
    %48 = tpu.iota {dimensions = array<i32: 0>} : vector<32x128xi32>
    %c16_i32_22 = arith.constant 16 : i32
    %c0_i32_23 = arith.constant 0 : i32
    %49 = arith.cmpi eq, %c16_i32_22, %c0_i32_23 : i32
    %c1_i32_24 = arith.constant 1 : i32
    %50 = arith.select %49, %c1_i32_24, %c16_i32_22 : i32
    %51 = vector.broadcast %50 : i32 to vector<32x128xi32>
    %52 = arith.remsi %48, %51 : vector<32x128xi32>
    %c0_i32_25 = arith.constant 0 : i32
    %53 = vector.broadcast %c0_i32_25 : i32 to vector<32x128xi32>
    %54 = arith.cmpi ne, %52, %53 : vector<32x128xi32>
    %c0_i32_26 = arith.constant 0 : i32
    %55 = vector.broadcast %c0_i32_26 : i32 to vector<32x128xi32>
    %56 = arith.cmpi slt, %52, %55 : vector<32x128xi32>
    %c0_i32_27 = arith.constant 0 : i32
    %57 = arith.cmpi slt, %50, %c0_i32_27 : i32
    %58 = vector.broadcast %57 : i1 to vector<32x128xi1>
    %59 = vector.broadcast %58 : vector<32x128xi1> to vector<32x128xi1>
    %60 = arith.xori %56, %59 : vector<32x128xi1>
    %61 = arith.andi %60, %54 : vector<32x128xi1>
    %62 = vector.broadcast %50 : i32 to vector<32x128xi32>
    %63 = arith.addi %52, %62 : vector<32x128xi32>
    %64 = arith.select %61, %63, %52 : vector<32x128xi1>, vector<32x128xi32>
    %c0_i32_28 = arith.constant 0 : i32
    %65 = vector.broadcast %c0_i32_28 : i32 to vector<32x128xi32>
    %66 = arith.cmpi eq, %64, %65 : vector<32x128xi32>
    %c1_i32_29 = arith.constant 1 : i32
    %67 = tpu.dynamic_rotate %47 by %c1_i32_29 dim 0 : vector<32x128xf32>, i32 -> vector<32x128xf32>
    %cst_30 = arith.constant 0.000000e+00 : f32
    %68 = vector.broadcast %cst_30 : f32 to vector<32x128xf32>
    %69 = arith.select %66, %68, %67 : vector<32x128xi1>, vector<32x128xf32>
    %c15_i32_31 = arith.constant 15 : i32
    %70 = vector.broadcast %c15_i32_31 : i32 to vector<32x128xi32>
    %71 = arith.cmpi eq, %64, %70 : vector<32x128xi32>
    %c31_i32_32 = arith.constant 31 : i32
    %72 = tpu.dynamic_rotate %47 by %c31_i32_32 dim 0 : vector<32x128xf32>, i32 -> vector<32x128xf32>
    %cst_33 = arith.constant 0.000000e+00 : f32
    %73 = vector.broadcast %cst_33 : f32 to vector<32x128xf32>
    %74 = arith.select %71, %73, %72 : vector<32x128xi1>, vector<32x128xf32>
    %75 = tpu.concatenate %69, %47, %74 in 1 : vector<32x128xf32>, vector<32x128xf32>, vector<32x128xf32> -> vector<32x384xf32>
    %c0_34 = arith.constant 0 : index
    %c0_35 = arith.constant 0 : index
    %76 = vector.load %arg8[%c0_34, %c0_35] : memref<384x128xf32, #tpu.memory_space<vmem>>, vector<384x128xf32>
    %cst_36 = arith.constant dense<0.000000e+00> : vector<32x128xf32>
    %77 = tpu.matmul %75, %76, %cst_36 {dimension_numbers = #tpu.dot_dimension_numbers<[1], [0], [0], [1], [0, 0, 1, 1], [], []>} : vector<32x384xf32>, vector<384x128xf32>, vector<32x128xf32> -> vector<32x128xf32>
    %78 = arith.addf %38, %77 : vector<32x128xf32>
    %c0_37 = arith.constant 0 : index
    %c0_38 = arith.constant 0 : index
    %79 = vector.load %arg9[%c0_37, %c0_38] : memref<32x128xf32, #tpu.memory_space<vmem>>, vector<32x128xf32>
    tpu.vector_store %arg9[%c0_37, %c0_38], %78 {strides = array<i32>} : memref<32x128xf32, #tpu.memory_space<vmem>>, vector<32x128xf32>,
    return
  }
  func.func @transform_0(%arg0: i32) -> (i32, i32) {
    %c0_i32 = arith.constant 0 : i32
    %c0_i32_0 = arith.constant 0 : i32
    return %arg0, %c0_i32 : i32, i32
  }
  func.func @transform_1(%arg0: i32) -> (i32, i32) {
    %c0_i32 = arith.constant 0 : i32
    %c0_i32_0 = arith.constant 0 : i32
    %c0_i32_1 = arith.constant 0 : i32
    return %c0_i32, %c0_i32_0 : i32, i32
  }
  func.func @transform_2(%arg0: i32) -> (i32, i32) {
    %c0_i32 = arith.constant 0 : i32
    %c0_i32_0 = arith.constant 0 : i32
    %c0_i32_1 = arith.constant 0 : i32
    return %c0_i32, %c0_i32_0 : i32, i32
  }
  func.func @transform_3(%arg0: i32) -> (i32, i32) {
    %c0_i32 = arith.constant 0 : i32
    %c0_i32_0 = arith.constant 0 : i32
    %c0_i32_1 = arith.constant 0 : i32
    return %c0_i32, %c0_i32_0 : i32, i32
  }
  func.func @transform_4(%arg0: i32) -> (i32, i32) {
    %c0_i32 = arith.constant 0 : i32
    %c0_i32_0 = arith.constant 0 : i32
    return %arg0, %c0_i32 : i32, i32
  }
  func.func @transform_5(%arg0: i32) -> (i32, i32) {
    %c0_i32 = arith.constant 0 : i32
    %c0_i32_0 = arith.constant 0 : i32
    %c0_i32_1 = arith.constant 0 : i32
    return %c0_i32, %c0_i32_0 : i32, i32
  }
  func.func @transform_6(%arg0: i32) -> (i32, i32) {
    %c0_i32 = arith.constant 0 : i32
    %c0_i32_0 = arith.constant 0 : i32
    %c0_i32_1 = arith.constant 0 : i32
    return %c0_i32, %c0_i32_0 : i32, i32
  }
  func.func @transform_7(%arg0: i32) -> (i32, i32) {
    %c0_i32 = arith.constant 0 : i32
    %c0_i32_0 = arith.constant 0 : i32
    %c0_i32_1 = arith.constant 0 : i32
    return %c0_i32, %c0_i32_0 : i32, i32
  }
  func.func @transform_8(%arg0: i32) -> (i32, i32) {
    %c0_i32 = arith.constant 0 : i32
    %c0_i32_0 = arith.constant 0 : i32
    return %arg0, %c0_i32 : i32, i32
  }
}

</mosaic_0001>

<llo_original>
// kernel: tile.28
$region0: #{tile.28}
  #allocation0 [shape = 's32[1]{0}', space=sflag, size = 0x4, scoped, tag = 'scoped memory for tile.28']
  %s0 = inlined_call_operand.vmem [shape: f32[4], index: 0, kind: input, shape index: {}]
  %s1 = inlined_call_operand.vmem [shape: f32[16,4], index: 1, kind: output, shape index: {}]
  // Predicated region
  $region2: #{tile.28} parent=0 // pred_check
    _
  $region3: #{tile.28} parent=0 // pred_check_branch
    %3 = sbr.rel (0) target = $region5
  $region4: #{tile.28} parent=0 // pred_region
    _
  $region5: #{tile.28} parent=0 // pred_fallthru
    _
  %v4 = vld [vmem:[%s0] ss:$0 sm:$0xff]
  %5 = vst [vmem:[%s1] sm:$0xff] %v4
  %s6 = scalar_lea.vmem %s1, 8
  %7 = vst [vmem:[%s6] sm:$0xff] %v4

// kernel: tile.29
$region0: #{tile.29}
  %s0 = inlined_call_operand.vmem [shape: f32[16,4], index: 0, kind: input, shape index: {}]
  %s1 = inlined_call_operand.vmem [shape: f32[64], index: 1, kind: output, shape index: {}]
  $region1: #{tile.29} parent=0
    #allocation0 [shape = 'u8[4096]{0}', space=vmem, size = 0x1000, scoped, tag = 'scoped mem for output reshape']
    %v2 = vld [vmem:[%s0] sm:$0x1]
    %vm3 = vcmask 31744
    %4 = vst.msk [vmem:[#allocation0] sm:$0x1] %vm3, %v2
    %s5 = scalar_lea.vmem %s0, 15
    %v6 = vld [vmem:[%s5] sm:$0x1]
    %7 = vrot.lane.b32.xlu0 %v6, 60
    %v8 = vpop.permute.xlu0 %7
    %vm9 = vcmask 523744
    %10 = vst.msk [vmem:[#allocation0] sm:$0x1] %vm9, %v8
    %s11 = scalar_lea.vmem %s0, 14
    %v12 = vld [vmem:[%s11] sm:$0x1]
    %13 = vrot.lane.b32.xlu0 %v12, 56
    %v14 = vpop.permute.xlu0 %13
    %vm15 = vcmask 490944
    %16 = vst.msk [vmem:[#allocation0] sm:$0x1] %vm15, %v14
    %s17 = scalar_lea.vmem %s0, 13
    %v18 = vld [vmem:[%s17] sm:$0x1]
    %19 = vrot.lane.b32.xlu0 %v18, 52
    %v20 = vpop.permute.xlu0 %19
    %vm21 = vcmask 458144
    %22 = vst.msk [vmem:[#allocation0] sm:$0x1] %vm21, %v20
    %s23 = scalar_lea.vmem %s0, 12
    %v24 = vld [vmem:[%s23] sm:$0x1]
    %25 = vrot.lane.b32.xlu0 %v24, 48
    %v26 = vpop.permute.xlu0 %25
    %vm27 = vcmask 425344
    %28 = vst.msk [vmem:[#allocation0] sm:$0x1] %vm27, %v26
    %s29 = scalar_lea.vmem %s0, 11
    %v30 = vld [vmem:[%s29] sm:$0x1]
    %31 = vrot.lane.b32.xlu0 %v30, 44
    %v32 = vpop.permute.xlu0 %31
    %vm33 = vcmask 392544
    %34 = vst.msk [vmem:[#allocation0] sm:$0x1] %vm33, %v32
    %s35 = scalar_lea.vmem %s0, 10
    %v36 = vld [vmem:[%s35] sm:$0x1]
    %37 = vrot.lane.b32.xlu0 %v36, 40
    %v38 = vpop.permute.xlu0 %37
    %vm39 = vcmask 359744
    %40 = vst.msk [vmem:[#allocation0] sm:$0x1] %vm39, %v38
    %s41 = scalar_lea.vmem %s0, 9
    %v42 = vld [vmem:[%s41] sm:$0x1]
    %43 = vrot.lane.b32.xlu0 %v42, 36
    %v44 = vpop.permute.xlu0 %43
    %vm45 = vcmask 326944
    %46 = vst.msk [vmem:[#allocation0] sm:$0x1] %vm45, %v44
    %s47 = scalar_lea.vmem %s0, 8
    %v48 = vld [vmem:[%s47] sm:$0x1]
    %49 = vrot.lane.b32.xlu0 %v48, 32
    %v50 = vpop.permute.xlu0 %49
    %vm51 = vcmask 294144
    %52 = vst.msk [vmem:[#allocation0] sm:$0x1] %vm51, %v50
    %s53 = scalar_lea.vmem %s0, 7
    %v54 = vld [vmem:[%s53] sm:$0x1]
    %55 = vrot.lane.b32.xlu0 %v54, 28
    %v56 = vpop.permute.xlu0 %55
    %vm57 = vcmask 261344
    %58 = vst.msk [vmem:[#allocation0] sm:$0x1] %vm57, %v56
    %s59 = scalar_lea.vmem %s0, 6
    %v60 = vld [vmem:[%s59] sm:$0x1]
    %61 = vrot.lane.b32.xlu0 %v60, 24
    %v62 = vpop.permute.xlu0 %61
    %vm63 = vcmask 228544
    %64 = vst.msk [vmem:[#allocation0] sm:$0x1] %vm63, %v62
    %s65 = scalar_lea.vmem %s0, 5
    %v66 = vld [vmem:[%s65] sm:$0x1]
    %67 = vrot.lane.b32.xlu0 %v66, 20
    %v68 = vpop.permute.xlu0 %67
    %vm69 = vcmask 195744
    %70 = vst.msk [vmem:[#allocation0] sm:$0x1] %vm69, %v68
    %s71 = scalar_lea.vmem %s0, 4
    %v72 = vld [vmem:[%s71] sm:$0x1]
    %73 = vrot.lane.b32.xlu0 %v72, 16
    %v74 = vpop.permute.xlu0 %73
    %vm75 = vcmask 162944
    %76 = vst.msk [vmem:[#allocation0] sm:$0x1] %vm75, %v74
    %s77 = scalar_lea.vmem %s0, 3
    %v78 = vld [vmem:[%s77] sm:$0x1]
    %79 = vrot.lane.b32.xlu0 %v78, 12
    %v80 = vpop.permute.xlu0 %79
    %vm81 = vcmask 130144
    %82 = vst.msk [vmem:[#allocation0] sm:$0x1] %vm81, %v80
    %s83 = scalar_lea.vmem %s0, 2
    %v84 = vld [vmem:[%s83] sm:$0x1]
    %85 = vrot.lane.b32.xlu0 %v84, 8
    %v86 = vpop.permute.xlu0 %85
    %vm87 = vcmask 97344
    %88 = vst.msk [vmem:[#allocation0] sm:$0x1] %vm87, %v86
    %s89 = scalar_lea.vmem %s0, 1
    %v90 = vld [vmem:[%s89] sm:$0x1]
    %91 = vrot.lane.b32.xlu0 %v90, 4
    %v92 = vpop.permute.xlu0 %91
    %vm93 = vcmask 64544
    %94 = vst.msk [vmem:[#allocation0] sm:$0x1] %vm93, %v92
    %s96 = sshll.u32 1, 1
    %s97 = ssub.s32 %s96, 1
    %v99 = vld [vmem:[#allocation0] sm:%s97]
    %s100 = sshll.u32 1, 1
    %s101 = ssub.s32 %s100, 1
    %102 = vst [vmem:[%s1] sm:%s101] %v99

// kernel: decode_forward.1
$region0: #{decode_forward.1}
  #allocation0 [shape = 'u32[]', space=smem, size = 0x4, offset = 0x4, fixed_abs, tag = 'smem constant byte address 0x4 - core index']
  #allocation1 [shape = 'u32[144,128]{1,0:T(1,128)}', space=vmem, size = 0x12000, scoped, tag = 'internal scratch']
  %s0 = inlined_call_operand.vmem [shape: f32[32,128], index: 0, kind: input, shape index: {}]
  %s1 = inlined_call_operand.vmem [shape: f32[1,128], index: 1, kind: input, shape index: {}]
  %s2 = inlined_call_operand.vmem [shape: f32[1,128], index: 2, kind: input, shape index: {}]
  %s3 = inlined_call_operand.vmem [shape: f32[384,128], index: 3, kind: input, shape index: {}]
  %s4 = inlined_call_operand.vmem [shape: f32[32,128], index: 4, kind: input, shape index: {}]
  %s5 = inlined_call_operand.vmem [shape: f32[1,128], index: 5, kind: input, shape index: {}]
  %s6 = inlined_call_operand.vmem [shape: f32[1,128], index: 6, kind: input, shape index: {}]
  %s7 = inlined_call_operand.vmem [shape: f32[384,128], index: 7, kind: input, shape index: {}]
  %s8 = inlined_call_operand.vmem [shape: f32[32,128], index: 8, kind: output, shape index: {}]
  %s9 = sld [smem:[#allocation0]]
  $region42: #{decode_forward.1} parent=0
    _
  %s11 = ssub.s32 1, %s9
  %s12 = scalar_select 0, %s11, %s9
  // Predicated region
  $region2: #{decode_forward.1} parent=0 // pred_check
    _
  $region3: #{decode_forward.1} parent=0 // pred_check_branch
    %14 = sbr.rel (0) target = $region5
  $region4: #{decode_forward.1} parent=0 // pred_region
    _
  $region5: #{decode_forward.1} parent=0 // pred_fallthru
    _
  // Predicated region
  $region6: #{decode_forward.1} parent=0 // pred_check
    _
  $region7: #{decode_forward.1} parent=0 // pred_check_branch
    %16 = sbr.rel (0) target = $region9
  $region8: #{decode_forward.1} parent=0 // pred_region
    _
  $region9: #{decode_forward.1} parent=0 // pred_fallthru
    _
  // Predicated region
  $region10: #{decode_forward.1} parent=0 // pred_check
    _
  $region11: #{decode_forward.1} parent=0 // pred_check_branch
    %18 = sbr.rel (0) target = $region13
  $region12: #{decode_forward.1} parent=0 // pred_region
    _
  $region13: #{decode_forward.1} parent=0 // pred_fallthru
    _
  // Predicated region
  $region14: #{decode_forward.1} parent=0 // pred_check
    _
  $region15: #{decode_forward.1} parent=0 // pred_check_branch
    %20 = sbr.rel (0) target = $region17
  $region16: #{decode_forward.1} parent=0 // pred_region
    _
  $region17: #{decode_forward.1} parent=0 // pred_fallthru
    _
  // Predicated region
  $region18: #{decode_forward.1} parent=0 // pred_check
    _
  $region19: #{decode_forward.1} parent=0 // pred_check_branch
    %22 = sbr.rel (0) target = $region21
  $region20: #{decode_forward.1} parent=0 // pred_region
    _
  $region21: #{decode_forward.1} parent=0 // pred_fallthru
    _
  // Predicated region
  $region22: #{decode_forward.1} parent=0 // pred_check
    _
  $region23: #{decode_forward.1} parent=0 // pred_check_branch
    %24 = sbr.rel (0) target = $region25
  $region24: #{decode_forward.1} parent=0 // pred_region
    _
  $region25: #{decode_forward.1} parent=0 // pred_fallthru
    _
  // Predicated region
  $region26: #{decode_forward.1} parent=0 // pred_check
    _
  $region27: #{decode_forward.1} parent=0 // pred_check_branch
    %26 = sbr.rel (0) target = $region29
  $region28: #{decode_forward.1} parent=0 // pred_region
    _
  $region29: #{decode_forward.1} parent=0 // pred_fallthru
    _
  // Predicated region
  $region30: #{decode_forward.1} parent=0 // pred_check
    _
  $region31: #{decode_forward.1} parent=0 // pred_check_branch
    %28 = sbr.rel (0) target = $region33
  $region32: #{decode_forward.1} parent=0 // pred_region
    _
  $region33: #{decode_forward.1} parent=0 // pred_fallthru
    _
  %v29 = vld [vmem:[%s0] sm:$0xff]
  %v30 = vld [vmem:[%s0 + $0x8] sm:$0xff]
  %v31 = vld [vmem:[%s0 + $0x10] sm:$0xff]
  %v32 = vld [vmem:[%s0 + $0x18] sm:$0xff]
  %v33 = vld [vmem:[%s1] sm:$0x1]
  %v35 = vlaneseq
  %v36 = vshrl.u32 %v35, 7
  %v37 = vsub.s32 0, %v36
  %v38 = vrot.slane %v33, %v37
  %v40 = vmul.f32 %v29, %v38
  %v41 = vmul.f32 %v30, %v38
  %v42 = vmul.f32 %v31, %v38
  %v43 = vmul.f32 %v32, %v38
  %v44 = vld [vmem:[%s2] sm:$0x1]
  %v46 = vlaneseq
  %v47 = vshrl.u32 %v46, 7
  %v48 = vsub.s32 0, %v47
  %v49 = vrot.slane %v44, %v48
  %v51 = vadd.f32 %v40, %v49
  %v52 = vadd.f32 %v41, %v49
  %v53 = vadd.f32 %v42, %v49
  %v54 = vadd.f32 %v43, %v49
  %v55 = vmax.f32 %v51, 0.0
  %v56 = vmax.f32 %v52, 0.0
  %v57 = vmax.f32 %v53, 0.0
  %v58 = vmax.f32 %v54, 0.0
  %v59 = vlaneseq
  %v60 = vshrl.u32 %v59, 7
  %v61 = vadd.s32 %v60, 8
  %v62 = vadd.s32 %v60, 16
  %v63 = vadd.s32 %v60, 24
  %vm64 = vcmp.lt.s32.totalorder %v60, 0
  %v65 = vsub.s32 0, %v60
  %v66 = vsel %vm64, %v65, %v60
  %v67 = vshrl.u32 %v66, 4
  %v68 = vand.u32 %v66, 15
  %v69 = vsub.s32 0, %v68
  %v70 = vsel %vm64, %v69, %v68
  %vm71 = vcmp.lt.s32.totalorder %v61, 0
  %v72 = vsub.s32 0, %v61
  %v73 = vsel %vm71, %v72, %v61
  %v74 = vshrl.u32 %v73, 4
  %v75 = vand.u32 %v73, 15
  %v76 = vsub.s32 0, %v75
  %v77 = vsel %vm71, %v76, %v75
  %vm78 = vcmp.lt.s32.totalorder %v62, 0
  %v79 = vsub.s32 0, %v62
  %v80 = vsel %vm78, %v79, %v62
  %v81 = vshrl.u32 %v80, 4
  %v82 = vand.u32 %v80, 15
  %v83 = vsub.s32 0, %v82
  %v84 = vsel %vm78, %v83, %v82
  %vm85 = vcmp.lt.s32.totalorder %v63, 0
  %v86 = vsub.s32 0, %v63
  %v87 = vsel %vm85, %v86, %v63
  %v88 = vshrl.u32 %v87, 4
  %v89 = vand.u32 %v87, 15
  %v90 = vsub.s32 0, %v89
  %v91 = vsel %vm85, %v90, %v89
  %vm92 = vcmp.ne.s32.totalorder %v70, 0
  %vm93 = vcmp.ne.s32.totalorder %v77, 0
  %vm94 = vcmp.ne.s32.totalorder %v84, 0
  %vm95 = vcmp.ne.s32.totalorder %v91, 0
  %vm96 = vcmp.lt.s32.totalorder %v70, 0
  %vm97 = vcmp.lt.s32.totalorder %v77, 0
  %vm98 = vcmp.lt.s32.totalorder %v84, 0
  %vm99 = vcmp.lt.s32.totalorder %v91, 0
  %vm100 = vmand %vm96, %vm92
  %vm101 = vmand %vm97, %vm93
  %vm102 = vmand %vm98, %vm94
  %vm103 = vmand %vm99, %vm95
  %v104 = vadd.s32 %v70, 16
  %v105 = vadd.s32 %v77, 16
  %v106 = vadd.s32 %v84, 16
  %v107 = vadd.s32 %v91, 16
  %v108 = vsel %vm100, %v104, %v70
  %v109 = vsel %vm101, %v105, %v77
  %v110 = vsel %vm102, %v106, %v84
  %v111 = vsel %vm103, %v107, %v91
  %vm112 = vcmp.eq.s32.totalorder %v108, 0
  %vm113 = vcmp.eq.s32.totalorder %v109, 0
  %vm114 = vcmp.eq.s32.totalorder %v110, 0
  %vm115 = vcmp.eq.s32.totalorder %v111, 0
  %v116 = vrot.slane %v55, 7
  %v117 = vrot.slane %v56, 7
  %v118 = vrot.slane %v57, 7
  %v119 = vrot.slane %v58, 7
  %vm120 = vcmp.lt.s32.totalorder %v60, 1
  %v121 = vsel %vm120, %v118, %v119
  %v122 = vsel %vm120, %v117, %v118
  %v123 = vsel %vm120, %v116, %v117
  %v124 = vsel %vm120, %v119, %v116
  %v125 = vsel %vm112, 0.0, %v124
  %v126 = vsel %vm113, 0.0, %v123
  %v127 = vsel %vm114, 0.0, %v122
  %v128 = vsel %vm115, 0.0, %v121
  %vm129 = vcmp.eq.s32.totalorder %v108, 15
  %vm130 = vcmp.eq.s32.totalorder %v109, 15
  %vm131 = vcmp.eq.s32.totalorder %v110, 15
  %vm132 = vcmp.eq.s32.totalorder %v111, 15
  %v133 = vrot.slane %v55, 1
  %v134 = vrot.slane %v56, 1
  %v135 = vrot.slane %v57, 1
  %v136 = vrot.slane %v58, 1
  %vm137 = vcmp.lt.s32.totalorder %v60, 7
  %v138 = vsel %vm137, %v135, %v136
  %v139 = vsel %vm137, %v134, %v135
  %v140 = vsel %vm137, %v133, %v134
  %v141 = vsel %vm137, %v136, %v133
  %v142 = vsel %vm129, 0.0, %v140
  %v143 = vsel %vm130, 0.0, %v139
  %v144 = vsel %vm131, 0.0, %v138
  %v145 = vsel %vm132, 0.0, %v141
  %v146 = vld [vmem:[%s3] sm:$0xff]
  %v147 = vld [vmem:[%s3 + $0x8] sm:$0xff]
  %v148 = vld [vmem:[%s3 + $0x10] sm:$0xff]
  %v149 = vld [vmem:[%s3 + $0x18] sm:$0xff]
  %v150 = vld [vmem:[%s3 + $0x20] sm:$0xff]
  %v151 = vld [vmem:[%s3 + $0x28] sm:$0xff]
  %v152 = vld [vmem:[%s3 + $0x30] sm:$0xff]
  %v153 = vld [vmem:[%s3 + $0x38] sm:$0xff]
  %v154 = vld [vmem:[%s3 + $0x40] sm:$0xff]
  %v155 = vld [vmem:[%s3 + $0x48] sm:$0xff]
  %v156 = vld [vmem:[%s3 + $0x50] sm:$0xff]
  %v157 = vld [vmem:[%s3 + $0x58] sm:$0xff]
  %v158 = vld [vmem:[%s3 + $0x60] sm:$0xff]
  %v159 = vld [vmem:[%s3 + $0x68] sm:$0xff]
  %v160 = vld [vmem:[%s3 + $0x70] sm:$0xff]
  %v161 = vld [vmem:[%s3 + $0x78] sm:$0xff]
  %v162 = vld [vmem:[%s3 + $0x80] sm:$0xff]
  %v163 = vld [vmem:[%s3 + $0x88] sm:$0xff]
  %v164 = vld [vmem:[%s3 + $0x90] sm:$0xff]
  %v165 = vld [vmem:[%s3 + $0x98] sm:$0xff]
  %v166 = vld [vmem:[%s3 + $0xa0] sm:$0xff]
  %v167 = vld [vmem:[%s3 + $0xa8] sm:$0xff]
  %v168 = vld [vmem:[%s3 + $0xb0] sm:$0xff]
  %v169 = vld [vmem:[%s3 + $0xb8] sm:$0xff]
  %v170 = vld [vmem:[%s3 + $0xc0] sm:$0xff]
  %v171 = vld [vmem:[%s3 + $0xc8] sm:$0xff]
  %v172 = vld [vmem:[%s3 + $0xd0] sm:$0xff]
  %v173 = vld [vmem:[%s3 + $0xd8] sm:$0xff]
  %v174 = vld [vmem:[%s3 + $0xe0] sm:$0xff]
  %v175 = vld [vmem:[%s3 + $0xe8] sm:$0xff]
  %v176 = vld [vmem:[%s3 + $0xf0] sm:$0xff]
  %v177 = vld [vmem:[%s3 + $0xf8] sm:$0xff]
  %v178 = vld [vmem:[%s3 + $0x100] sm:$0xff]
  %v179 = vld [vmem:[%s3 + $0x108] sm:$0xff]
  %v180 = vld [vmem:[%s3 + $0x110] sm:$0xff]
  %v181 = vld [vmem:[%s3 + $0x118] sm:$0xff]
  %v182 = vld [vmem:[%s3 + $0x120] sm:$0xff]
  %v183 = vld [vmem:[%s3 + $0x128] sm:$0xff]
  %v184 = vld [vmem:[%s3 + $0x130] sm:$0xff]
  %v185 = vld [vmem:[%s3 + $0x138] sm:$0xff]
  %v186 = vld [vmem:[%s3 + $0x140] sm:$0xff]
  %v187 = vld [vmem:[%s3 + $0x148] sm:$0xff]
  %v188 = vld [vmem:[%s3 + $0x150] sm:$0xff]
  %v189 = vld [vmem:[%s3 + $0x158] sm:$0xff]
  %v190 = vld [vmem:[%s3 + $0x160] sm:$0xff]
  %v191 = vld [vmem:[%s3 + $0x168] sm:$0xff]
  %v192 = vld [vmem:[%s3 + $0x170] sm:$0xff]
  %v193 = vld [vmem:[%s3 + $0x178] sm:$0xff]
  %v194 = vld [vmem:[%s4] sm:$0xff]
  %v195 = vld [vmem:[%s4 + $0x8] sm:$0xff]
  %v196 = vld [vmem:[%s4 + $0x10] sm:$0xff]
  %v197 = vld [vmem:[%s4 + $0x18] sm:$0xff]
  %v198 = vld [vmem:[%s5] sm:$0x1]
  %v200 = vlaneseq
  %v201 = vshrl.u32 %v200, 7
  %v202 = vsub.s32 0, %v201
  %v203 = vrot.slane %v198, %v202
  %v205 = vmul.f32 %v194, %v203
  %v206 = vmul.f32 %v195, %v203
  %v207 = vmul.f32 %v196, %v203
  %v208 = vmul.f32 %v197, %v203
  %v209 = vld [vmem:[%s6] sm:$0x1]
  %v211 = vlaneseq
  %v212 = vshrl.u32 %v211, 7
  %v213 = vsub.s32 0, %v212
  %v214 = vrot.slane %v209, %v213
  %v216 = vadd.f32 %v205, %v214
  %v217 = vadd.f32 %v206, %v214
  %v218 = vadd.f32 %v207, %v214
  %v219 = vadd.f32 %v208, %v214
  %v220 = vmax.f32 %v216, 0.0
  %v221 = vmax.f32 %v217, 0.0
  %v222 = vmax.f32 %v218, 0.0
  %v223 = vmax.f32 %v219, 0.0
  %v224 = vrot.slane %v220, 7
  %v225 = vrot.slane %v221, 7
  %v226 = vrot.slane %v222, 7
  %v227 = vrot.slane %v223, 7
  %v228 = vsel %vm120, %v226, %v227
  %v229 = vsel %vm120, %v225, %v226
  %v230 = vsel %vm120, %v224, %v225
  %v231 = vsel %vm120, %v227, %v224
  %v232 = vsel %vm112, 0.0, %v231
  %v233 = vsel %vm113, 0.0, %v230
  %v234 = vsel %vm114, 0.0, %v229
  %v235 = vsel %vm115, 0.0, %v228
  %v236 = vrot.slane %v220, 1
  %v237 = vrot.slane %v221, 1
  %v238 = vrot.slane %v222, 1
  %v239 = vrot.slane %v223, 1
  %v240 = vsel %vm137, %v238, %v239
  %v241 = vsel %vm137, %v237, %v238
  %v242 = vsel %vm137, %v236, %v237
  %v243 = vsel %vm137, %v239, %v236
  %v244 = vsel %vm129, 0.0, %v242
  %v245 = vsel %vm130, 0.0, %v241
  %v246 = vsel %vm131, 0.0, %v240
  %v247 = vsel %vm132, 0.0, %v243
  %v248 = vld [vmem:[%s7] sm:$0xff]
  %v249 = vld [vmem:[%s7 + $0x8] sm:$0xff]
  %v250 = vld [vmem:[%s7 + $0x10] sm:$0xff]
  %v251 = vld [vmem:[%s7 + $0x18] sm:$0xff]
  %v252 = vld [vmem:[%s7 + $0x20] sm:$0xff]
  %v253 = vld [vmem:[%s7 + $0x28] sm:$0xff]
  %v254 = vld [vmem:[%s7 + $0x30] sm:$0xff]
  %v255 = vld [vmem:[%s7 + $0x38] sm:$0xff]
  %v256 = vld [vmem:[%s7 + $0x40] sm:$0xff]
  %v257 = vld [vmem:[%s7 + $0x48] sm:$0xff]
  %v258 = vld [vmem:[%s7 + $0x50] sm:$0xff]
  %v259 = vld [vmem:[%s7 + $0x58] sm:$0xff]
  %v260 = vld [vmem:[%s7 + $0x60] sm:$0xff]
  %v261 = vld [vmem:[%s7 + $0x68] sm:$0xff]
  %v262 = vld [vmem:[%s7 + $0x70] sm:$0xff]
  %v263 = vld [vmem:[%s7 + $0x78] sm:$0xff]
  %v264 = vld [vmem:[%s7 + $0x80] sm:$0xff]
  %v265 = vld [vmem:[%s7 + $0x88] sm:$0xff]
  %v266 = vld [vmem:[%s7 + $0x90] sm:$0xff]
  %v267 = vld [vmem:[%s7 + $0x98] sm:$0xff]
  %v268 = vld [vmem:[%s7 + $0xa0] sm:$0xff]
  %v269 = vld [vmem:[%s7 + $0xa8] sm:$0xff]
  %v270 = vld [vmem:[%s7 + $0xb0] sm:$0xff]
  %v271 = vld [vmem:[%s7 + $0xb8] sm:$0xff]
  %v272 = vld [vmem:[%s7 + $0xc0] sm:$0xff]
  %v273 = vld [vmem:[%s7 + $0xc8] sm:$0xff]
  %v274 = vld [vmem:[%s7 + $0xd0] sm:$0xff]
  %v275 = vld [vmem:[%s7 + $0xd8] sm:$0xff]
  %v276 = vld [vmem:[%s7 + $0xe0] sm:$0xff]
  %v277 = vld [vmem:[%s7 + $0xe8] sm:$0xff]
  %v278 = vld [vmem:[%s7 + $0xf0] sm:$0xff]
  %v279 = vld [vmem:[%s7 + $0xf8] sm:$0xff]
  %v280 = vld [vmem:[%s7 + $0x100] sm:$0xff]
  %v281 = vld [vmem:[%s7 + $0x108] sm:$0xff]
  %v282 = vld [vmem:[%s7 + $0x110] sm:$0xff]
  %v283 = vld [vmem:[%s7 + $0x118] sm:$0xff]
  %v284 = vld [vmem:[%s7 + $0x120] sm:$0xff]
  %v285 = vld [vmem:[%s7 + $0x128] sm:$0xff]
  %v286 = vld [vmem:[%s7 + $0x130] sm:$0xff]
  %v287 = vld [vmem:[%s7 + $0x138] sm:$0xff]
  %v288 = vld [vmem:[%s7 + $0x140] sm:$0xff]
  %v289 = vld [vmem:[%s7 + $0x148] sm:$0xff]
  %v290 = vld [vmem:[%s7 + $0x150] sm:$0xff]
  %v291 = vld [vmem:[%s7 + $0x158] sm:$0xff]
  %v292 = vld [vmem:[%s7 + $0x160] sm:$0xff]
  %v293 = vld [vmem:[%s7 + $0x168] sm:$0xff]
  %v294 = vld [vmem:[%s7 + $0x170] sm:$0xff]
  %v295 = vld [vmem:[%s7 + $0x178] sm:$0xff]
  %296 = vmatprep.subr.mxu0 0.0
  %297 = vmatpush1.msra.mxu0 %v263
  %298 = vmatprep.subr.mxu0 0.0
  %299 = vmatpush1.msra.mxu0 %v262
  %300 = vmatprep.subr.mxu0 0.0
  %301 = vmatpush1.msra.mxu0 %v261
  %302 = vmatprep.subr.mxu0 0.0
  %303 = vmatpush1.msra.mxu0 %v260
  %304 = vmatprep.subr.mxu0 0.0
  %305 = vmatpush1.msra.mxu0 %v259
  %306 = vmatprep.subr.mxu0 0.0
  %307 = vmatpush1.msra.mxu0 %v258
  %308 = vmatprep.subr.mxu0 0.0
  %309 = vmatpush1.msra.mxu0 %v257
  %310 = vmatprep.subr.mxu0 0.0
  %311 = vmatpush1.msra.mxu0 %v256
  %312 = vmatprep.subr.mxu0 0.0
  %313 = vmatpush1.msra.mxu0 %v255
  %314 = vmatprep.subr.mxu0 0.0
  %315 = vmatpush1.msra.mxu0 %v254
  %316 = vmatprep.subr.mxu0 0.0
  %317 = vmatpush1.msra.mxu0 %v253
  %318 = vmatprep.subr.mxu0 0.0
  %319 = vmatpush1.msra.mxu0 %v252
  %320 = vmatprep.subr.mxu0 0.0
  %321 = vmatpush1.msra.mxu0 %v251
  %322 = vmatprep.subr.mxu0 0.0
  %323 = vmatpush1.msra.mxu0 %v250
  %324 = vmatprep.subr.mxu0 0.0
  %325 = vmatpush1.msra.mxu0 %v249
  %326 = vmatprep.subr.mxu0 0.0
  %327 = vmatpush1.msra.mxu0 %v248
  %328 = vmatprep.subr.mxu0 0.0
  %329 = vmatpush2.msra.mxu0 %v279
  %330 = vmatprep.subr.mxu0 0.0
  %331 = vmatpush2.msra.mxu0 %v278
  %332 = vmatprep.subr.mxu0 0.0
  %333 = vmatpush2.msra.mxu0 %v277
  %334 = vmatprep.subr.mxu0 0.0
  %335 = vmatpush2.msra.mxu0 %v276
  %336 = vmatprep.subr.mxu0 0.0
  %337 = vmatpush2.msra.mxu0 %v275
  %338 = vmatprep.subr.mxu0 0.0
  %339 = vmatpush2.msra.mxu0 %v274
  %340 = vmatprep.subr.mxu0 0.0
  %341 = vmatpush2.msra.mxu0 %v273
  %342 = vmatprep.subr.mxu0 0.0
  %343 = vmatpush2.msra.mxu0 %v272
  %344 = vmatprep.subr.mxu0 0.0
  %345 = vmatpush2.msra.mxu0 %v271
  %346 = vmatprep.subr.mxu0 0.0
  %347 = vmatpush2.msra.mxu0 %v270
  %348 = vmatprep.subr.mxu0 0.0
  %349 = vmatpush2.msra.mxu0 %v269
  %350 = vmatprep.subr.mxu0 0.0
  %351 = vmatpush2.msra.mxu0 %v268
  %352 = vmatprep.subr.mxu0 0.0
  %353 = vmatpush2.msra.mxu0 %v267
  %354 = vmatprep.subr.mxu0 0.0
  %355 = vmatpush2.msra.mxu0 %v266
  %356 = vmatprep.subr.mxu0 0.0
  %357 = vmatpush2.msra.mxu0 %v265
  %358 = vmatprep.subr.mxu0 0.0
  %359 = vmatpush2.msra.mxu0 %v264
  %360 = vmatprep.mubr.f32.mxu0 %v220
  %361 = vmatmul.mubr.f32.gmra.mxu0 %v232
  %v362 = vpop.f32.mrf.mxu0
  %v363 = vadd.f32 0.0, %v362
  %v364 = vpop.f32.mrf.mxu0
  %365 = vmatprep.mubr.f32.mxu0 %v221
  %366 = vmatmul.mubr.f32.gmra.mxu0 %v233
  %v367 = vpop.f32.mrf.mxu0
  %v368 = vadd.f32 0.0, %v367
  %v369 = vpop.f32.mrf.mxu0
  %370 = vmatprep.mubr.f32.mxu0 %v222
  %371 = vmatmul.mubr.f32.gmra.mxu0 %v234
  %v372 = vpop.f32.mrf.mxu0
  %v373 = vadd.f32 0.0, %v372
  %v374 = vpop.f32.mrf.mxu0
  %375 = vmatprep.mubr.f32.mxu0 %v223
  %376 = vmatmul.mubr.f32.gmra.mxu0 %v235
  %v377 = vpop.f32.mrf.mxu0
  %v378 = vadd.f32 0.0, %v377
  %v379 = vpop.f32.mrf.mxu0
  %380 = vdwg.mxu0
  %381 = vmatprep.subr.mxu0 0.0
  %382 = vmatpush1.msra.mxu0 %v295
  %383 = vmatprep.subr.mxu0 0.0
  %384 = vmatpush1.msra.mxu0 %v294
  %385 = vmatprep.subr.mxu0 0.0
  %386 = vmatpush1.msra.mxu0 %v293
  %387 = vmatprep.subr.mxu0 0.0
  %388 = vmatpush1.msra.mxu0 %v292
  %389 = vmatprep.subr.mxu0 0.0
  %390 = vmatpush1.msra.mxu0 %v291
  %391 = vmatprep.subr.mxu0 0.0
  %392 = vmatpush1.msra.mxu0 %v290
  %393 = vmatprep.subr.mxu0 0.0
  %394 = vmatpush1.msra.mxu0 %v289
  %395 = vmatprep.subr.mxu0 0.0
  %396 = vmatpush1.msra.mxu0 %v288
  %397 = vmatprep.subr.mxu0 0.0
  %398 = vmatpush1.msra.mxu0 %v287
  %399 = vmatprep.subr.mxu0 0.0
  %400 = vmatpush1.msra.mxu0 %v286
  %401 = vmatprep.subr.mxu0 0.0
  %402 = vmatpush1.msra.mxu0 %v285
  %403 = vmatprep.subr.mxu0 0.0
  %404 = vmatpush1.msra.mxu0 %v284
  %405 = vmatprep.subr.mxu0 0.0
  %406 = vmatpush1.msra.mxu0 %v283
  %407 = vmatprep.subr.mxu0 0.0
  %408 = vmatpush1.msra.mxu0 %v282
  %409 = vmatprep.subr.mxu0 0.0
  %410 = vmatpush1.msra.mxu0 %v281
  %411 = vmatprep.subr.mxu0 0.0
  %412 = vmatpush1.msra.mxu0 %v280
  %413 = vmatprep.subr.mxu0 0.0
  %414 = vmatpush2.msra.mxu0 0.0
  %415 = vmatprep.subr.mxu0 0.0
  %416 = vmatpush2.msra.mxu0 0.0
  %417 = vmatprep.subr.mxu0 0.0
  %418 = vmatpush2.msra.mxu0 0.0
  %419 = vmatprep.subr.mxu0 0.0
  %420 = vmatpush2.msra.mxu0 0.0
  %421 = vmatprep.subr.mxu0 0.0
  %422 = vmatpush2.msra.mxu0 0.0
  %423 = vmatprep.subr.mxu0 0.0
  %424 = vmatpush2.msra.mxu0 0.0
  %425 = vmatprep.subr.mxu0 0.0
  %426 = vmatpush2.msra.mxu0 0.0
  %427 = vmatprep.subr.mxu0 0.0
  %428 = vmatpush2.msra.mxu0 0.0
  %429 = vmatprep.subr.mxu0 0.0
  %430 = vmatpush2.msra.mxu0 0.0
  %431 = vmatprep.subr.mxu0 0.0
  %432 = vmatpush2.msra.mxu0 0.0
  %433 = vmatprep.subr.mxu0 0.0
  %434 = vmatpush2.msra.mxu0 0.0
  %435 = vmatprep.subr.mxu0 0.0
  %436 = vmatpush2.msra.mxu0 0.0
  %437 = vmatprep.subr.mxu0 0.0
  %438 = vmatpush2.msra.mxu0 0.0
  %439 = vmatprep.subr.mxu0 0.0
  %440 = vmatpush2.msra.mxu0 0.0
  %441 = vmatprep.subr.mxu0 0.0
  %442 = vmatpush2.msra.mxu0 0.0
  %443 = vmatprep.subr.mxu0 0.0
  %444 = vmatpush2.msra.mxu0 0.0
  %445 = vmatprep.mubr.f32.mxu0 0.0
  %446 = vmatmul.mubr.f32.gmra.mxu0 %v244
  %v447 = vpop.f32.mrf.mxu0
  %v448 = vadd.f32 %v363, %v447
  %v449 = vpop.f32.mrf.mxu0
  %450 = vmatprep.mubr.f32.mxu0 0.0
  %451 = vmatmul.mubr.f32.gmra.mxu0 %v245
  %v452 = vpop.f32.mrf.mxu0
  %v453 = vadd.f32 %v368, %v452
  %v454 = vpop.f32.mrf.mxu0
  %455 = vmatprep.mubr.f32.mxu0 0.0
  %456 = vmatmul.mubr.f32.gmra.mxu0 %v246
  %v457 = vpop.f32.mrf.mxu0
  %v458 = vadd.f32 %v373, %v457
  %v459 = vpop.f32.mrf.mxu0
  %460 = vmatprep.mubr.f32.mxu0 0.0
  %461 = vmatmul.mubr.f32.gmra.mxu0 %v247
  %v462 = vpop.f32.mrf.mxu0
  %v463 = vadd.f32 %v378, %v462
  %v464 = vpop.f32.mrf.mxu0
  %465 = vdwg.mxu0
  %466 = vmatprep.subr.mxu0 0.0
  %467 = vmatpush1.msra.mxu0 %v161
  %468 = vmatprep.subr.mxu0 0.0
  %469 = vmatpush1.msra.mxu0 %v160
  %470 = vmatprep.subr.mxu0 0.0
  %471 = vmatpush1.msra.mxu0 %v159
  %472 = vmatprep.subr.mxu0 0.0
  %473 = vmatpush1.msra.mxu0 %v158
  %474 = vmatprep.subr.mxu0 0.0
  %475 = vmatpush1.msra.mxu0 %v157
  %476 = vmatprep.subr.mxu0 0.0
  %477 = vmatpush1.msra.mxu0 %v156
  %478 = vmatprep.subr.mxu0 0.0
  %479 = vmatpush1.msra.mxu0 %v155
  %480 = vmatprep.subr.mxu0 0.0
  %481 = vmatpush1.msra.mxu0 %v154
  %482 = vmatprep.subr.mxu0 0.0
  %483 = vmatpush1.msra.mxu0 %v153
  %484 = vmatprep.subr.mxu0 0.0
  %485 = vmatpush1.msra.mxu0 %v152
  %486 = vmatprep.subr.mxu0 0.0
  %487 = vmatpush1.msra.mxu0 %v151
  %488 = vmatprep.subr.mxu0 0.0
  %489 = vmatpush1.msra.mxu0 %v150
  %490 = vmatprep.subr.mxu0 0.0
  %491 = vmatpush1.msra.mxu0 %v149
  %492 = vmatprep.subr.mxu0 0.0
  %493 = vmatpush1.msra.mxu0 %v148
  %494 = vmatprep.subr.mxu0 0.0
  %495 = vmatpush1.msra.mxu0 %v147
  %496 = vmatprep.subr.mxu0 0.0
  %497 = vmatpush1.msra.mxu0 %v146
  %498 = vmatprep.subr.mxu0 0.0
  %499 = vmatpush2.msra.mxu0 %v177
  %500 = vmatprep.subr.mxu0 0.0
  %501 = vmatpush2.msra.mxu0 %v176
  %502 = vmatprep.subr.mxu0 0.0
  %503 = vmatpush2.msra.mxu0 %v175
  %504 = vmatprep.subr.mxu0 0.0
  %505 = vmatpush2.msra.mxu0 %v174
  %506 = vmatprep.subr.mxu0 0.0
  %507 = vmatpush2.msra.mxu0 %v173
  %508 = vmatprep.subr.mxu0 0.0
  %509 = vmatpush2.msra.mxu0 %v172
  %510 = vmatprep.subr.mxu0 0.0
  %511 = vmatpush2.msra.mxu0 %v171
  %512 = vmatprep.subr.mxu0 0.0
  %513 = vmatpush2.msra.mxu0 %v170
  %514 = vmatprep.subr.mxu0 0.0
  %515 = vmatpush2.msra.mxu0 %v169
  %516 = vmatprep.subr.mxu0 0.0
  %517 = vmatpush2.msra.mxu0 %v168
  %518 = vmatprep.subr.mxu0 0.0
  %519 = vmatpush2.msra.mxu0 %v167
  %520 = vmatprep.subr.mxu0 0.0
  %521 = vmatpush2.msra.mxu0 %v166
  %522 = vmatprep.subr.mxu0 0.0
  %523 = vmatpush2.msra.mxu0 %v165
  %524 = vmatprep.subr.mxu0 0.0
  %525 = vmatpush2.msra.mxu0 %v164
  %526 = vmatprep.subr.mxu0 0.0
  %527 = vmatpush2.msra.mxu0 %v163
  %528 = vmatprep.subr.mxu0 0.0
  %529 = vmatpush2.msra.mxu0 %v162
  %530 = vmatprep.mubr.f32.mxu0 %v55
  %531 = vmatmul.mubr.f32.gmra.mxu0 %v125
  %v532 = vpop.f32.mrf.mxu0
  %v533 = vadd.f32 %v448, %v532
  %v534 = vpop.f32.mrf.mxu0
  %535 = vmatprep.mubr.f32.mxu0 %v56
  %536 = vmatmul.mubr.f32.gmra.mxu0 %v126
  %v537 = vpop.f32.mrf.mxu0
  %v538 = vadd.f32 %v453, %v537
  %v539 = vpop.f32.mrf.mxu0
  %540 = vmatprep.mubr.f32.mxu0 %v57
  %541 = vmatmul.mubr.f32.gmra.mxu0 %v127
  %v542 = vpop.f32.mrf.mxu0
  %v543 = vadd.f32 %v458, %v542
  %v544 = vpop.f32.mrf.mxu0
  %545 = vmatprep.mubr.f32.mxu0 %v58
  %546 = vmatmul.mubr.f32.gmra.mxu0 %v128
  %v547 = vpop.f32.mrf.mxu0
  %v548 = vadd.f32 %v463, %v547
  %v549 = vpop.f32.mrf.mxu0
  %550 = vdwg.mxu0
  %551 = vmatprep.subr.mxu0 0.0
  %552 = vmatpush1.msra.mxu0 %v193
  %553 = vmatprep.subr.mxu0 0.0
  %554 = vmatpush1.msra.mxu0 %v192
  %555 = vmatprep.subr.mxu0 0.0
  %556 = vmatpush1.msra.mxu0 %v191
  %557 = vmatprep.subr.mxu0 0.0
  %558 = vmatpush1.msra.mxu0 %v190
  %559 = vmatprep.subr.mxu0 0.0
  %560 = vmatpush1.msra.mxu0 %v189
  %561 = vmatprep.subr.mxu0 0.0
  %562 = vmatpush1.msra.mxu0 %v188
  %563 = vmatprep.subr.mxu0 0.0
  %564 = vmatpush1.msra.mxu0 %v187
  %565 = vmatprep.subr.mxu0 0.0
  %566 = vmatpush1.msra.mxu0 %v186
  %567 = vmatprep.subr.mxu0 0.0
  %568 = vmatpush1.msra.mxu0 %v185
  %569 = vmatprep.subr.mxu0 0.0
  %570 = vmatpush1.msra.mxu0 %v184
  %571 = vmatprep.subr.mxu0 0.0
  %572 = vmatpush1.msra.mxu0 %v183
  %573 = vmatprep.subr.mxu0 0.0
  %574 = vmatpush1.msra.mxu0 %v182
  %575 = vmatprep.subr.mxu0 0.0
  %576 = vmatpush1.msra.mxu0 %v181
  %577 = vmatprep.subr.mxu0 0.0
  %578 = vmatpush1.msra.mxu0 %v180
  %579 = vmatprep.subr.mxu0 0.0
  %580 = vmatpush1.msra.mxu0 %v179
  %581 = vmatprep.subr.mxu0 0.0
  %582 = vmatpush1.msra.mxu0 %v178
  %583 = vmatprep.subr.mxu0 0.0
  %584 = vmatpush2.msra.mxu0 0.0
  %585 = vmatprep.subr.mxu0 0.0
  %586 = vmatpush2.msra.mxu0 0.0
  %587 = vmatprep.subr.mxu0 0.0
  %588 = vmatpush2.msra.mxu0 0.0
  %589 = vmatprep.subr.mxu0 0.0
  %590 = vmatpush2.msra.mxu0 0.0
  %591 = vmatprep.subr.mxu0 0.0
  %592 = vmatpush2.msra.mxu0 0.0
  %593 = vmatprep.subr.mxu0 0.0
  %594 = vmatpush2.msra.mxu0 0.0
  %595 = vmatprep.subr.mxu0 0.0
  %596 = vmatpush2.msra.mxu0 0.0
  %597 = vmatprep.subr.mxu0 0.0
  %598 = vmatpush2.msra.mxu0 0.0
  %599 = vmatprep.subr.mxu0 0.0
  %600 = vmatpush2.msra.mxu0 0.0
  %601 = vmatprep.subr.mxu0 0.0
  %602 = vmatpush2.msra.mxu0 0.0
  %603 = vmatprep.subr.mxu0 0.0
  %604 = vmatpush2.msra.mxu0 0.0
  %605 = vmatprep.subr.mxu0 0.0
  %606 = vmatpush2.msra.mxu0 0.0
  %607 = vmatprep.subr.mxu0 0.0
  %608 = vmatpush2.msra.mxu0 0.0
  %609 = vmatprep.subr.mxu0 0.0
  %610 = vmatpush2.msra.mxu0 0.0
  %611 = vmatprep.subr.mxu0 0.0
  %612 = vmatpush2.msra.mxu0 0.0
  %613 = vmatprep.subr.mxu0 0.0
  %614 = vmatpush2.msra.mxu0 0.0
  %615 = vmatprep.mubr.f32.mxu0 0.0
  %616 = vmatmul.mubr.f32.gmra.mxu0 %v142
  %v617 = vpop.f32.mrf.mxu0
  %v618 = vadd.f32 %v533, %v617
  %v619 = vpop.f32.mrf.mxu0
  %620 = vmatprep.mubr.f32.mxu0 0.0
  %621 = vmatmul.mubr.f32.gmra.mxu0 %v143
  %v622 = vpop.f32.mrf.mxu0
  %v623 = vadd.f32 %v538, %v622
  %v624 = vpop.f32.mrf.mxu0
  %625 = vmatprep.mubr.f32.mxu0 0.0
  %626 = vmatmul.mubr.f32.gmra.mxu0 %v144
  %v627 = vpop.f32.mrf.mxu0
  %v628 = vadd.f32 %v543, %v627
  %v629 = vpop.f32.mrf.mxu0
  %630 = vmatprep.mubr.f32.mxu0 0.0
  %631 = vmatmul.mubr.f32.gmra.mxu0 %v145
  %v632 = vpop.f32.mrf.mxu0
  %v633 = vadd.f32 %v548, %v632
  %v634 = vpop.f32.mrf.mxu0
  %635 = vdwg.mxu0
  %636 = vst [vmem:[%s8] sm:$0xff] %v618
  %637 = vst [vmem:[%s8 + $0x8] sm:$0xff] %v623
  %638 = vst [vmem:[%s8 + $0x10] sm:$0xff] %v628
  %639 = vst [vmem:[%s8 + $0x18] sm:$0xff] %v633
  // Predicated region
  $region34: #{decode_forward.1} parent=0 // pred_check
    _
  $region35: #{decode_forward.1} parent=0 // pred_check_branch
    %641 = sbr.rel (0) target = $region37
  $region36: #{decode_forward.1} parent=0 // pred_region
    _
  $region37: #{decode_forward.1} parent=0 // pred_fallthru
    _
  // Predicated region
  $region38: #{decode_forward.1} parent=0 // pred_check
    _
  $region39: #{decode_forward.1} parent=0 // pred_check_branch
    %643 = sbr.rel (0) target = $region41
  $region40: #{decode_forward.1} parent=0 // pred_region
    _
  $region41: #{decode_forward.1} parent=0 // pred_fallthru
    _

</llo_original>
